<compile_context>
chip_gen: v7x
topology: tpu7x:2x2x1
jax: 0.10.0
libtpu: 0.0.40
codegen_flags: <defaults>
</compile_context>

<pallas_src>
import jax
import jax.numpy as jnp
from jax.experimental import pallas as pl
from jax.experimental.pallas import tpu as pltpu

IN_DIM = 8
H1 = 128
H2 = 64
OUT_DIM = 4
MAX_TILE_B = 2048  # per-step VMEM footprint at 2048 rows is a few MiB -> fine on v5e/v6e/v7x


def _round_up(n, m):
    return ((n + m - 1) // m) * m


def _choose_tile(bp):
    """Largest multiple-of-8 tile <= MAX_TILE_B that divides bp.

    Capped so the grid has >= 2 steps when bp >= 16 (lets the 'parallel' batch axis
    actually use both TensorCores on v7x; harmless single-TC no-op on v5e/v6e).
    """
    max_tile = min(MAX_TILE_B, bp)
    if bp >= 16:
        max_tile = min(max_tile, _round_up(pl.cdiv(bp, 2), 8))
    max_tile = max(8, (max_tile // 8) * 8)
    for t in range(max_tile, 0, -8):
        if bp % t == 0:
            return t
    return 8


def mlp_kernel(x_ref, w1_ref, b1_ref, w2_ref, b2_ref, w3_ref, b3_ref, o_ref):
    # fc1 + ReLU (bf16 MXU inputs, f32 accumulation, f32 elementwise -- keep f32 for v5e).
    x = x_ref[...].astype(jnp.bfloat16)
    h1 = jnp.dot(x, w1_ref[...], preferred_element_type=jnp.float32)
    h1 = jnp.maximum(h1 + b1_ref[...], 0.0)
    # fc2 + ReLU
    h2 = jnp.dot(h1.astype(jnp.bfloat16), w2_ref[...],
                 preferred_element_type=jnp.float32)
    h2 = jnp.maximum(h2 + b2_ref[...], 0.0)
    # fc3 (narrow 4-lane output; block last dim == full array dim, so no padding needed)
    out = jnp.dot(h2.astype(jnp.bfloat16), w3_ref[...],
                  preferred_element_type=jnp.float32)
    o_ref[...] = out + b3_ref[...]


@jax.jit
def net_forward(x, w1, b1, w2, b2, w3, b3):
    """Forward pass. x: (batch, 8) f32. Weights bf16 (in, out), biases f32 (1, out).

    Returns (batch, 4) f32.
    """
    batch = x.shape[0]

    if batch % 8 == 0:
        # Common case (RL batches): no padding, divisor-search tile.
        bp = batch
        tile_b = _choose_tile(bp)
        x_in = x
    elif batch <= MAX_TILE_B:
        # Small ragged batch: one full-array block (block dims == array dims is legal),
        # avoids re-materializing x with jnp.pad.
        bp = batch
        tile_b = batch
        x_in = x
    else:
        # Rare: large ragged batch -- pad to a multiple of 8 once, then tile.
        bp = _round_up(batch, 8)
        x_in = jnp.pad(x, ((0, bp - batch), (0, 0)))
        tile_b = _choose_tile(bp)

    grid = (bp // tile_b,)

    flops = 2 * bp * (IN_DIM * H1 + H1 * H2 + H2 * OUT_DIM)
    bytes_accessed = (
        bp * IN_DIM * 4                                   # x (f32)
        + (IN_DIM * H1 + H1 * H2 + H2 * OUT_DIM) * 2      # weights (bf16)
        + (H1 + H2 + OUT_DIM) * 4                         # biases (f32)
        + bp * OUT_DIM * 4                                # output (f32)
    )

    out = pl.pallas_call(
        mlp_kernel,
        out_shape=jax.ShapeDtypeStruct((bp, OUT_DIM), jnp.float32),
        grid_spec=pltpu.PrefetchScalarGridSpec(
            num_scalar_prefetch=0,
            grid=grid,
            in_specs=[
                pl.BlockSpec((tile_b, IN_DIM), lambda i: (i, 0)),  # x: tiled on batch
                pl.BlockSpec((IN_DIM, H1), lambda i: (0, 0)),      # w1: VMEM-resident
                pl.BlockSpec((1, H1), lambda i: (0, 0)),           # b1
                pl.BlockSpec((H1, H2), lambda i: (0, 0)),          # w2
                pl.BlockSpec((1, H2), lambda i: (0, 0)),           # b2
                pl.BlockSpec((H2, OUT_DIM), lambda i: (0, 0)),     # w3
                pl.BlockSpec((1, OUT_DIM), lambda i: (0, 0)),      # b3
            ],
            out_specs=pl.BlockSpec((tile_b, OUT_DIM), lambda i: (i, 0)),
        ),
        compiler_params=pltpu.CompilerParams(
            dimension_semantics=("parallel",),
        ),
        cost_estimate=pl.CostEstimate(
            flops=flops, transcendentals=0, bytes_accessed=bytes_accessed),
    )(x_in, w1, b1, w2, b2, w3, b3)

    if bp != batch:
        out = out[:batch]
    return out


def init_params(key, in_dim=IN_DIM, h1=H1, h2=H2, out_dim=OUT_DIM):
    """Deterministic init mimicking nn.Linear (uniform +-1/sqrt(fan_in)).

    Returns bf16 weights of shape (in, out) (i.e. PyTorch weight transposed) and
    f32 biases of shape (1, out).
    """
    ks = jax.random.split(key, 6)

    def linear(kw, kb, fan_in, fan_out):
        bound = 1.0 / jnp.sqrt(float(fan_in))
        w = jax.random.uniform(kw, (fan_in, fan_out), jnp.float32, -bound, bound)
        b = jax.random.uniform(kb, (1, fan_out), jnp.float32, -bound, bound)
        return w.astype(jnp.bfloat16), b

    w1, b1 = linear(ks[0], ks[1], in_dim, h1)
    w2, b2 = linear(ks[2], ks[3], h1, h2)
    w3, b3 = linear(ks[4], ks[5], h2, out_dim)
    return (w1, b1, w2, b2, w3, b3)


def ref_forward(x, w1, b1, w2, b2, w3, b3):
    """Plain-JAX reference with the same dtype flow as the kernel."""
    h1 = jnp.maximum(
        jnp.dot(x.astype(jnp.bfloat16), w1, preferred_element_type=jnp.float32) + b1, 0.0)
    h2 = jnp.maximum(
        jnp.dot(h1.astype(jnp.bfloat16), w2, preferred_element_type=jnp.float32) + b2, 0.0)
    return jnp.dot(h2.astype(jnp.bfloat16), w3, preferred_element_type=jnp.float32) + b3


if __name__ == "__main__":
    key = jax.random.PRNGKey(0)
    k_x, k_p = jax.random.split(key)

    batch = 8
    x = jax.random.normal(k_x, (batch, IN_DIM), jnp.float32)  # LunarLander obs dim = 8
    params = init_params(k_p)

    out = net_forward(x, *params)
    out = jax.block_until_ready(out)

    ref = ref_forward(x, *params)
    assert out.shape == (batch, OUT_DIM)
    assert jnp.allclose(out, ref, atol=1e-4, rtol=1e-4), (
        f"max abs err {jnp.max(jnp.abs(out - ref))}")

    print("KERNEL_OK")
</pallas_src>

<mosaic_0001>
module attributes {stable_mosaic.version = 11 : i64} {
  func.func @mlp_kernel(%arg0: i32, %arg1: memref<8x8xf32, #tpu.memory_space<vmem>>, %arg2: memref<8x128xbf16, #tpu.memory_space<vmem>>, %arg3: memref<1x128xf32, #tpu.memory_space<vmem>>, %arg4: memref<128x64xbf16, #tpu.memory_space<vmem>>, %arg5: memref<1x64xf32, #tpu.memory_space<vmem>>, %arg6: memref<64x4xbf16, #tpu.memory_space<vmem>>, %arg7: memref<1x4xf32, #tpu.memory_space<vmem>>, %arg8: memref<8x4xf32, #tpu.memory_space<vmem>>) attributes {dimension_semantics = [#tpu.dimension_semantics<parallel>], iteration_bounds = array<i64: 1>, scalar_prefetch = 0 : i64, scratch_operands = 0 : i64, tpu.core_type = #tpu.core_type<tc>, window_params = [{transform_indices = @transform_0, window_bounds = array<i64: 8, 8>}, {pipeline_mode = #tpu.pipeline_mode<synchronous>, transform_indices = @transform_1, window_bounds = array<i64: 8, 128>}, {pipeline_mode = #tpu.pipeline_mode<synchronous>, transform_indices = @transform_2, window_bounds = array<i64: 1, 128>}, {pipeline_mode = #tpu.pipeline_mode<synchronous>, transform_indices = @transform_3, window_bounds = array<i64: 128, 64>}, {pipeline_mode = #tpu.pipeline_mode<synchronous>, transform_indices = @transform_4, window_bounds = array<i64: 1, 64>}, {pipeline_mode = #tpu.pipeline_mode<synchronous>, transform_indices = @transform_5, window_bounds = array<i64: 64, 4>}, {pipeline_mode = #tpu.pipeline_mode<synchronous>, transform_indices = @transform_6, window_bounds = array<i64: 1, 4>}, {transform_indices = @transform_7, window_bounds = array<i64: 8, 4>}]} {
    %c0 = arith.constant 0 : index
    %c0_0 = arith.constant 0 : index
    %0 = vector.load %arg1[%c0, %c0_0] : memref<8x8xf32, #tpu.memory_space<vmem>>, vector<8x8xf32>
    %1 = arith.truncf %0 : vector<8x8xf32> to vector<8x8xbf16>
    %c0_1 = arith.constant 0 : index
    %c0_2 = arith.constant 0 : index
    %2 = vector.load %arg2[%c0_1, %c0_2] : memref<8x128xbf16, #tpu.memory_space<vmem>>, vector<8x128xbf16>
    %cst = arith.constant dense<0.000000e+00> : vector<8x128xf32>
    %3 = tpu.matmul %1, %2, %cst {dimension_numbers = #tpu.dot_dimension_numbers<[1], [0], [0], [1], [0, 0, 1, 1], [], []>} : vector<8x8xbf16>, vector<8x128xbf16>, vector<8x128xf32> -> vector<8x128xf32>
    %c0_3 = arith.constant 0 : index
    %c0_4 = arith.constant 0 : index
    %4 = vector.load %arg3[%c0_3, %c0_4] : memref<1x128xf32, #tpu.memory_space<vmem>>, vector<1x128xf32>
    %5 = vector.broadcast %4 : vector<1x128xf32> to vector<8x128xf32>
    %6 = arith.addf %3, %5 : vector<8x128xf32>
    %cst_5 = arith.constant 0.000000e+00 : f32
    %7 = vector.broadcast %cst_5 : f32 to vector<8x128xf32>
    %8 = arith.maximumf %6, %7 : vector<8x128xf32>
    %9 = arith.truncf %8 : vector<8x128xf32> to vector<8x128xbf16>
    %c0_6 = arith.constant 0 : index
    %c0_7 = arith.constant 0 : index
    %10 = vector.load %arg4[%c0_6, %c0_7] : memref<128x64xbf16, #tpu.memory_space<vmem>>, vector<128x64xbf16>
    %cst_8 = arith.constant dense<0.000000e+00> : vector<8x64xf32>
    %11 = tpu.matmul %9, %10, %cst_8 {dimension_numbers = #tpu.dot_dimension_numbers<[1], [0], [0], [1], [0, 0, 1, 1], [], []>} : vector<8x128xbf16>, vector<128x64xbf16>, vector<8x64xf32> -> vector<8x64xf32>
    %c0_9 = arith.constant 0 : index
    %c0_10 = arith.constant 0 : index
    %12 = vector.load %arg5[%c0_9, %c0_10] : memref<1x64xf32, #tpu.memory_space<vmem>>, vector<1x64xf32>
    %13 = vector.broadcast %12 : vector<1x64xf32> to vector<8x64xf32>
    %14 = arith.addf %11, %13 : vector<8x64xf32>
    %cst_11 = arith.constant 0.000000e+00 : f32
    %15 = vector.broadcast %cst_11 : f32 to vector<8x64xf32>
    %16 = arith.maximumf %14, %15 : vector<8x64xf32>
    %17 = arith.truncf %16 : vector<8x64xf32> to vector<8x64xbf16>
    %c0_12 = arith.constant 0 : index
    %c0_13 = arith.constant 0 : index
    %18 = vector.load %arg6[%c0_12, %c0_13] : memref<64x4xbf16, #tpu.memory_space<vmem>>, vector<64x4xbf16>
    %cst_14 = arith.constant dense<0.000000e+00> : vector<8x4xf32>
    %19 = tpu.matmul %17, %18, %cst_14 {dimension_numbers = #tpu.dot_dimension_numbers<[1], [0], [0], [1], [0, 0, 1, 1], [], []>} : vector<8x64xbf16>, vector<64x4xbf16>, vector<8x4xf32> -> vector<8x4xf32>
    %c0_15 = arith.constant 0 : index
    %c0_16 = arith.constant 0 : index
    %20 = vector.load %arg7[%c0_15, %c0_16] : memref<1x4xf32, #tpu.memory_space<vmem>>, vector<1x4xf32>
    %21 = vector.broadcast %20 : vector<1x4xf32> to vector<8x4xf32>
    %22 = arith.addf %19, %21 : vector<8x4xf32>
    %c0_17 = arith.constant 0 : index
    %c0_18 = arith.constant 0 : index
    %23 = vector.load %arg8[%c0_17, %c0_18] : memref<8x4xf32, #tpu.memory_space<vmem>>, vector<8x4xf32>
    tpu.vector_store %arg8[%c0_17, %c0_18], %22 {strides = array<i32>} : memref<8x4xf32, #tpu.memory_space<vmem>>, vector<8x4xf32>,
    return
  }
  func.func @transform_0(%arg0: i32) -> (i32, i32) {
    %c0_i32 = arith.constant 0 : i32
    %c0_i32_0 = arith.constant 0 : i32
    return %arg0, %c0_i32 : i32, i32
  }
  func.func @transform_1(%arg0: i32) -> (i32, i32) {
    %c0_i32 = arith.constant 0 : i32
    %c0_i32_0 = arith.constant 0 : i32
    %c0_i32_1 = arith.constant 0 : i32
    return %c0_i32, %c0_i32_0 : i32, i32
  }
  func.func @transform_2(%arg0: i32) -> (i32, i32) {
    %c0_i32 = arith.constant 0 : i32
    %c0_i32_0 = arith.constant 0 : i32
    %c0_i32_1 = arith.constant 0 : i32
    return %c0_i32, %c0_i32_0 : i32, i32
  }
  func.func @transform_3(%arg0: i32) -> (i32, i32) {
    %c0_i32 = arith.constant 0 : i32
    %c0_i32_0 = arith.constant 0 : i32
    %c0_i32_1 = arith.constant 0 : i32
    return %c0_i32, %c0_i32_0 : i32, i32
  }
  func.func @transform_4(%arg0: i32) -> (i32, i32) {
    %c0_i32 = arith.constant 0 : i32
    %c0_i32_0 = arith.constant 0 : i32
    %c0_i32_1 = arith.constant 0 : i32
    return %c0_i32, %c0_i32_0 : i32, i32
  }
  func.func @transform_5(%arg0: i32) -> (i32, i32) {
    %c0_i32 = arith.constant 0 : i32
    %c0_i32_0 = arith.constant 0 : i32
    %c0_i32_1 = arith.constant 0 : i32
    return %c0_i32, %c0_i32_0 : i32, i32
  }
  func.func @transform_6(%arg0: i32) -> (i32, i32) {
    %c0_i32 = arith.constant 0 : i32
    %c0_i32_0 = arith.constant 0 : i32
    %c0_i32_1 = arith.constant 0 : i32
    return %c0_i32, %c0_i32_0 : i32, i32
  }
  func.func @transform_7(%arg0: i32) -> (i32, i32) {
    %c0_i32 = arith.constant 0 : i32
    %c0_i32_0 = arith.constant 0 : i32
    return %arg0, %c0_i32 : i32, i32
  }
}

</mosaic_0001>

<llo_original>
// kernel: net_forward.1
$region0: #{net_forward.1}
  #allocation0 [shape = 'u32[]', space=smem, size = 0x4, offset = 0x4, fixed_abs, tag = 'smem constant byte address 0x4 - core index']
  #allocation1 [shape = 'u32[144,128]{1,0:T(1,128)}', space=vmem, size = 0x12000, scoped, tag = 'internal scratch']
  %s0 = inlined_call_operand.vmem [shape: f32[8,8], index: 0, kind: input, shape index: {}]
  %s1 = inlined_call_operand.vmem [shape: bf16[8,128], index: 1, kind: input, shape index: {}]
  %s2 = inlined_call_operand.vmem [shape: f32[1,128], index: 2, kind: input, shape index: {}]
  %s3 = inlined_call_operand.vmem [shape: bf16[128,64], index: 3, kind: input, shape index: {}]
  %s4 = inlined_call_operand.vmem [shape: f32[1,64], index: 4, kind: input, shape index: {}]
  %s5 = inlined_call_operand.vmem [shape: bf16[64,4], index: 5, kind: input, shape index: {}]
  %s6 = inlined_call_operand.vmem [shape: f32[1,4], index: 6, kind: input, shape index: {}]
  %s7 = inlined_call_operand.vmem [shape: f32[8,4], index: 7, kind: output, shape index: {}]
  %s8 = sld [smem:[#allocation0]]
  $region38: #{net_forward.1} parent=0
    _
  %s10 = ssub.s32 1, %s8
  %s11 = scalar_select 0, %s10, %s8
  // Predicated region
  $region2: #{net_forward.1} parent=0 // pred_check
    _
  $region3: #{net_forward.1} parent=0 // pred_check_branch
    %13 = sbr.rel (0) target = $region5
  $region4: #{net_forward.1} parent=0 // pred_region
    _
  $region5: #{net_forward.1} parent=0 // pred_fallthru
    _
  // Predicated region
  $region6: #{net_forward.1} parent=0 // pred_check
    _
  $region7: #{net_forward.1} parent=0 // pred_check_branch
    %15 = sbr.rel (0) target = $region9
  $region8: #{net_forward.1} parent=0 // pred_region
    _
  $region9: #{net_forward.1} parent=0 // pred_fallthru
    _
  // Predicated region
  $region10: #{net_forward.1} parent=0 // pred_check
    _
  $region11: #{net_forward.1} parent=0 // pred_check_branch
    %17 = sbr.rel (0) target = $region13
  $region12: #{net_forward.1} parent=0 // pred_region
    _
  $region13: #{net_forward.1} parent=0 // pred_fallthru
    _
  // Predicated region
  $region14: #{net_forward.1} parent=0 // pred_check
    _
  $region15: #{net_forward.1} parent=0 // pred_check_branch
    %19 = sbr.rel (0) target = $region17
  $region16: #{net_forward.1} parent=0 // pred_region
    _
  $region17: #{net_forward.1} parent=0 // pred_fallthru
    _
  // Predicated region
  $region18: #{net_forward.1} parent=0 // pred_check
    _
  $region19: #{net_forward.1} parent=0 // pred_check_branch
    %21 = sbr.rel (0) target = $region21
  $region20: #{net_forward.1} parent=0 // pred_region
    _
  $region21: #{net_forward.1} parent=0 // pred_fallthru
    _
  // Predicated region
  $region22: #{net_forward.1} parent=0 // pred_check
    _
  $region23: #{net_forward.1} parent=0 // pred_check_branch
    %23 = sbr.rel (0) target = $region25
  $region24: #{net_forward.1} parent=0 // pred_region
    _
  $region25: #{net_forward.1} parent=0 // pred_fallthru
    _
  // Predicated region
  $region26: #{net_forward.1} parent=0 // pred_check
    _
  $region27: #{net_forward.1} parent=0 // pred_check_branch
    %25 = sbr.rel (0) target = $region29
  $region28: #{net_forward.1} parent=0 // pred_region
    _
  $region29: #{net_forward.1} parent=0 // pred_fallthru
    _
  %v27 = vld [vmem:[%s0] sm:$0xff]
  %v28 = vpack.c.bf16 %v27, %v27
  %v29 = vld [vmem:[%s1] sm:$0xf]
  %v30 = vld [vmem:[%s2] sm:$0x1]
  %v32 = vlaneseq
  %v33 = vshrl.u32 %v32, 7
  %v34 = vsub.s32 0, %v33
  %v35 = vrot.slane %v30, %v34
  %vm37 = vcmask 64512
  %v39 = vsel %vm37, %v28, 0
  %vm41 = vcmask 1043456
  %v43 = vsel %vm41, %v29, 0
  %45 = vmatprep.subr.bf16.mxu0 0
  %46 = vmatpush1.bf16.msra.mxu0 %v43
  %47 = vmatprep.subr.bf16.mxu0 0
  %48 = vmatpush1.bf16.msra.mxu0 0
  %49 = vmatprep.subr.bf16.mxu0 0
  %50 = vmatpush1.bf16.msra.mxu0 0
  %51 = vmatprep.subr.bf16.mxu0 0
  %52 = vmatpush1.bf16.msra.mxu0 0
  %53 = vmatprep.subr.bf16.mxu0 0
  %54 = vmatpush1.bf16.msra.mxu0 0
  %55 = vmatprep.subr.bf16.mxu0 0
  %56 = vmatpush1.bf16.msra.mxu0 0
  %57 = vmatprep.subr.bf16.mxu0 0
  %58 = vmatpush1.bf16.msra.mxu0 0
  %59 = vmatprep.subr.bf16.mxu0 0
  %60 = vmatpush1.bf16.msra.mxu0 0
  %61 = vmatprep.subr.bf16.mxu0 0
  %62 = vmatpush1.bf16.msra.mxu0 0
  %63 = vmatprep.subr.bf16.mxu0 0
  %64 = vmatpush1.bf16.msra.mxu0 0
  %65 = vmatprep.subr.bf16.mxu0 0
  %66 = vmatpush1.bf16.msra.mxu0 0
  %67 = vmatprep.subr.bf16.mxu0 0
  %68 = vmatpush1.bf16.msra.mxu0 0
  %69 = vmatprep.subr.bf16.mxu0 0
  %70 = vmatpush1.bf16.msra.mxu0 0
  %71 = vmatprep.subr.bf16.mxu0 0
  %72 = vmatpush1.bf16.msra.mxu0 0
  %73 = vmatprep.subr.bf16.mxu0 0
  %74 = vmatpush1.bf16.msra.mxu0 0
  %75 = vmatprep.subr.bf16.mxu0 0
  %76 = vmatpush1.bf16.msra.mxu0 0
  %77 = vmatprep.mubr.bf16.mxu0 0
  %78 = vmatmul.mubr.bf16.gmra.mrb[0].mxu0 %v39
  %v79 = vpop.f32.mrb[0].mxu0
  %v80 = vadd.f32 %v35, %v79
  %v81 = vpop.f32.mrb[0].mxu0
  %v82 = vpop.f32.mrb[0].mxu0
  %v83 = vpop.f32.mrb[0].mxu0
  %84 = vdwg.mxu0
  %v85 = vmax.f32 %v80, 0.0
  %v86 = vpack.c.bf16 %v85, %v85
  %v87 = vld [vmem:[%s3] sm:$0xf]
  %v88 = vld [vmem:[%s3 + $0x4] sm:$0xf]
  %v89 = vld [vmem:[%s3 + $0x8] sm:$0xf]
  %v90 = vld [vmem:[%s3 + $0xc] sm:$0xf]
  %v91 = vld [vmem:[%s3 + $0x10] sm:$0xf]
  %v92 = vld [vmem:[%s3 + $0x14] sm:$0xf]
  %v93 = vld [vmem:[%s3 + $0x18] sm:$0xf]
  %v94 = vld [vmem:[%s3 + $0x1c] sm:$0xf]
  %v95 = vld [vmem:[%s3 + $0x20] sm:$0xf]
  %v96 = vld [vmem:[%s3 + $0x24] sm:$0xf]
  %v97 = vld [vmem:[%s3 + $0x28] sm:$0xf]
  %v98 = vld [vmem:[%s3 + $0x2c] sm:$0xf]
  %v99 = vld [vmem:[%s3 + $0x30] sm:$0xf]
  %v100 = vld [vmem:[%s3 + $0x34] sm:$0xf]
  %v101 = vld [vmem:[%s3 + $0x38] sm:$0xf]
  %v102 = vld [vmem:[%s3 + $0x3c] sm:$0xf]
  %v103 = vld [vmem:[%s4] sm:$0x1]
  %v105 = vlaneseq
  %v106 = vshrl.u32 %v105, 7
  %v107 = vsub.s32 0, %v106
  %v108 = vrot.slane %v103, %v107
  %v126 = vunpack.c.l.b16 %v87
  %v127 = vunpack.c.l.b16 %v88
  %v128 = vunpack.c.l.b16 %v89
  %v129 = vunpack.c.l.b16 %v90
  %v130 = vunpack.c.l.b16 %v91
  %v131 = vunpack.c.l.b16 %v92
  %v132 = vunpack.c.l.b16 %v93
  %v133 = vunpack.c.l.b16 %v94
  %v134 = vunpack.c.l.b16 %v95
  %v135 = vunpack.c.l.b16 %v96
  %v136 = vunpack.c.l.b16 %v97
  %v137 = vunpack.c.l.b16 %v98
  %v138 = vunpack.c.l.b16 %v99
  %v139 = vunpack.c.l.b16 %v100
  %v140 = vunpack.c.l.b16 %v101
  %v141 = vunpack.c.l.b16 %v102
  %v142 = vpack.c.b16 %v127, %v126
  %v143 = vpack.c.b16 %v129, %v128
  %v144 = vpack.c.b16 %v131, %v130
  %v145 = vpack.c.b16 %v133, %v132
  %v146 = vpack.c.b16 %v135, %v134
  %v147 = vpack.c.b16 %v137, %v136
  %v148 = vpack.c.b16 %v139, %v138
  %v149 = vpack.c.b16 %v141, %v140
  %158 = vmatprep.subr.bf16.mxu0 0
  %159 = vmatpush1.bf16.msra.mxu0 %v142
  %160 = vmatprep.subr.bf16.mxu0 0
  %161 = vmatpush1.bf16.msra.mxu0 %v143
  %162 = vmatprep.subr.bf16.mxu0 0
  %163 = vmatpush1.bf16.msra.mxu0 %v144
  %164 = vmatprep.subr.bf16.mxu0 0
  %165 = vmatpush1.bf16.msra.mxu0 %v145
  %166 = vmatprep.subr.bf16.mxu0 0
  %167 = vmatpush1.bf16.msra.mxu0 %v146
  %168 = vmatprep.subr.bf16.mxu0 0
  %169 = vmatpush1.bf16.msra.mxu0 %v147
  %170 = vmatprep.subr.bf16.mxu0 0
  %171 = vmatpush1.bf16.msra.mxu0 %v148
  %172 = vmatprep.subr.bf16.mxu0 0
  %173 = vmatpush1.bf16.msra.mxu0 %v149
  %174 = vmatprep.subr.bf16.mxu0 0
  %175 = vmatpush1.bf16.msra.mxu0 0
  %176 = vmatprep.subr.bf16.mxu0 0
  %177 = vmatpush1.bf16.msra.mxu0 0
  %178 = vmatprep.subr.bf16.mxu0 0
  %179 = vmatpush1.bf16.msra.mxu0 0
  %180 = vmatprep.subr.bf16.mxu0 0
  %181 = vmatpush1.bf16.msra.mxu0 0
  %182 = vmatprep.subr.bf16.mxu0 0
  %183 = vmatpush1.bf16.msra.mxu0 0
  %184 = vmatprep.subr.bf16.mxu0 0
  %185 = vmatpush1.bf16.msra.mxu0 0
  %186 = vmatprep.subr.bf16.mxu0 0
  %187 = vmatpush1.bf16.msra.mxu0 0
  %188 = vmatprep.subr.bf16.mxu0 0
  %189 = vmatpush1.bf16.msra.mxu0 0
  %190 = vmatprep.mubr.bf16.mxu0 0
  %191 = vmatmul.mubr.bf16.gmra.mrb[0].mxu0 %v86
  %v192 = vpop.f32.mrb[0].mxu0
  %v193 = vadd.f32 %v108, %v192
  %v194 = vpop.f32.mrb[0].mxu0
  %v195 = vpop.f32.mrb[0].mxu0
  %v196 = vpop.f32.mrb[0].mxu0
  %197 = vdwg.mxu0
  %v198 = vmax.f32 %v193, 0.0
  %v199 = vpack.c.bf16 %v198, %v198
  %v200 = vld [vmem:[%s5] sm:$0xf]
  %v201 = vld [vmem:[%s5 + $0x4] sm:$0xf]
  %v202 = vld [vmem:[%s5 + $0x8] sm:$0xf]
  %v203 = vld [vmem:[%s5 + $0xc] sm:$0xf]
  %v204 = vld [vmem:[%s5 + $0x10] sm:$0xf]
  %v205 = vld [vmem:[%s5 + $0x14] sm:$0xf]
  %v206 = vld [vmem:[%s5 + $0x18] sm:$0xf]
  %v207 = vld [vmem:[%s5 + $0x1c] sm:$0xf]
  %v208 = vld [vmem:[%s6] sm:$0x1]
  %v210 = vlaneseq
  %v211 = vshrl.u32 %v210, 7
  %v212 = vsub.s32 0, %v211
  %v213 = vrot.slane %v208, %v212
  %v223 = vunpack.c.l.b16 %v200
  %v224 = vunpack.c.l.b16 %v201
  %v225 = vunpack.c.l.b16 %v202
  %v226 = vunpack.c.l.b16 %v203
  %v227 = vunpack.c.l.b16 %v204
  %v228 = vunpack.c.l.b16 %v205
  %v229 = vunpack.c.l.b16 %v206
  %v230 = vunpack.c.l.b16 %v207
  %v231 = vpack.c.b16 %v224, %v223
  %v232 = vpack.c.b16 %v226, %v225
  %v233 = vpack.c.b16 %v228, %v227
  %v234 = vpack.c.b16 %v230, %v229
  %vm239 = vcmask 523264
  %v241 = vsel %vm239, %v199, 0
  %243 = vmatprep.subr.bf16.mxu0 0
  %244 = vmatpush1.bf16.msra.mxu0 %v231
  %245 = vmatprep.subr.bf16.mxu0 0
  %246 = vmatpush1.bf16.msra.mxu0 %v232
  %247 = vmatprep.subr.bf16.mxu0 0
  %248 = vmatpush1.bf16.msra.mxu0 %v233
  %249 = vmatprep.subr.bf16.mxu0 0
  %250 = vmatpush1.bf16.msra.mxu0 %v234
  %251 = vmatprep.subr.bf16.mxu0 0
  %252 = vmatpush1.bf16.msra.mxu0 0
  %253 = vmatprep.subr.bf16.mxu0 0
  %254 = vmatpush1.bf16.msra.mxu0 0
  %255 = vmatprep.subr.bf16.mxu0 0
  %256 = vmatpush1.bf16.msra.mxu0 0
  %257 = vmatprep.subr.bf16.mxu0 0
  %258 = vmatpush1.bf16.msra.mxu0 0
  %259 = vmatprep.subr.bf16.mxu0 0
  %260 = vmatpush1.bf16.msra.mxu0 0
  %261 = vmatprep.subr.bf16.mxu0 0
  %262 = vmatpush1.bf16.msra.mxu0 0
  %263 = vmatprep.subr.bf16.mxu0 0
  %264 = vmatpush1.bf16.msra.mxu0 0
  %265 = vmatprep.subr.bf16.mxu0 0
  %266 = vmatpush1.bf16.msra.mxu0 0
  %267 = vmatprep.subr.bf16.mxu0 0
  %268 = vmatpush1.bf16.msra.mxu0 0
  %269 = vmatprep.subr.bf16.mxu0 0
  %270 = vmatpush1.bf16.msra.mxu0 0
  %271 = vmatprep.subr.bf16.mxu0 0
  %272 = vmatpush1.bf16.msra.mxu0 0
  %273 = vmatprep.subr.bf16.mxu0 0
  %274 = vmatpush1.bf16.msra.mxu0 0
  %275 = vmatprep.mubr.bf16.mxu0 0
  %276 = vmatmul.mubr.bf16.gmra.mrb[0].mxu0 %v241
  %v277 = vpop.f32.mrb[0].mxu0
  %v278 = vadd.f32 %v213, %v277
  %v279 = vpop.f32.mrb[0].mxu0
  %v280 = vpop.f32.mrb[0].mxu0
  %v281 = vpop.f32.mrb[0].mxu0
  %282 = vdwg.mxu0
  %vm283 = vcmask 31744
  %284 = vst.msk [vmem:[%s7] sm:$0xff] %vm283, %v278
  // Predicated region
  $region30: #{net_forward.1} parent=0 // pred_check
    _
  $region31: #{net_forward.1} parent=0 // pred_check_branch
    %286 = sbr.rel (0) target = $region33
  $region32: #{net_forward.1} parent=0 // pred_region
    _
  $region33: #{net_forward.1} parent=0 // pred_fallthru
    _
  // Predicated region
  $region34: #{net_forward.1} parent=0 // pred_check
    _
  $region35: #{net_forward.1} parent=0 // pred_check_branch
    %288 = sbr.rel (0) target = $region37
  $region36: #{net_forward.1} parent=0 // pred_region
    _
  $region37: #{net_forward.1} parent=0 // pred_fallthru
    _

</llo_original>
